<compile_context>
chip_gen: v6e
topology: v6e:2x2x1
jax: 0.10.0
libtpu: 0.0.40
codegen_flags: <defaults>
</compile_context>

<pallas_src>
import functools

import jax
import jax.numpy as jnp
from jax import lax
from jax.experimental import pallas as pl
from jax.experimental.pallas import tpu as pltpu

_LANES = 128
_SUBLANES = 8
_MAX_TILE_ROWS = 8192      # (8192, 128) f32 = 4 MiB per input per buffer
_CHUNK_ROWS = 512          # in-kernel compute chunk (bounds VMEM temporaries)
_EPS = 1e-7


def _round_down(x, m):
    return (x // m) * m


def _maskiou_sums_kernel(p_ref, g_ref, acc_ref, *, n_valid, tile_rows,
                         chunk_rows, fold_rows, full_tiles, needs_mask):
    """Accumulate per-split partial sums of sigmoid(p)*g and sigmoid(p)+g.

    p_ref, g_ref: (tile_rows, 128) VMEM tiles of the flattened masks (native
                  dtype; cast to f32 in-VMEM).
    acc_ref:      (1, 2, fold_rows, 128) resident output block for this split:
                  [0, 0] -> partial sum(p*g), [0, 1] -> partial sum(p) + sum(g).
    """
    s = pl.program_id(0)            # split index (outer, "parallel")
    i = pl.program_id(1)            # step within split (inner, "arbitrary")

    @pl.when(i == 0)
    def _init():
        acc_ref[...] = jnp.zeros_like(acc_ref)

    flat_step = s * pl.num_programs(1) + i
    num_chunks = tile_rows // chunk_rows

    def _fold(x):
        # Fold a (chunk_rows, 128) value into a fixed small accumulator with
        # pure VALU adds; the cross-lane reduction happens once, in the
        # wrapper, on a handful of vregs.
        if fold_rows == 1:
            return x.sum(axis=0, keepdims=True)                    # (1, 128)
        return x.reshape(-1, _SUBLANES, _LANES).sum(axis=0)        # (8, 128)

    def _chunk_sums(c, masked):
        if isinstance(c, int):
            r0 = c * chunk_rows
        else:
            r0 = pl.multiple_of(c * chunk_rows, chunk_rows)
        pv = jax.nn.sigmoid(p_ref[pl.ds(r0, chunk_rows), :].astype(jnp.float32))
        gv = g_ref[pl.ds(r0, chunk_rows), :].astype(jnp.float32)
        if masked:
            # n_valid is 128-aligned (the wrapper finishes any sub-128 tail
            # itself), so a per-row mask suffices -> much cheaper than two
            # full (rows, 128) int32 iotas.
            rid = lax.broadcasted_iota(jnp.int32, (chunk_rows, 1), 0)
            row_start = (flat_step * tile_rows + r0 + rid) * _LANES
            ok = row_start < n_valid
            pv = jnp.where(ok, pv, 0.0)
            gv = jnp.where(ok, gv, 0.0)
        # union = sum(p) + sum(g) - intersection, so one fused (p + g) stream.
        return _fold(pv * gv), _fold(pv + gv)

    def _accumulate(masked):
        if num_chunks == 1:
            inter, both = _chunk_sums(0, masked)
        else:
            def body(c, carry):
                ic, bc = carry
                di, db = _chunk_sums(c, masked)
                return ic + di, bc + db
            zeros = jnp.zeros((fold_rows, _LANES), jnp.float32)
            inter, both = lax.fori_loop(0, num_chunks, body, (zeros, zeros))
        acc_ref[0, 0] += inter
        acc_ref[0, 1] += both

    if not needs_mask:
        _accumulate(False)
    else:
        @pl.when(flat_step < full_tiles)        # hot path: fully-valid tiles
        def _hot():
            _accumulate(False)

        @pl.when(flat_step >= full_tiles)       # partial-edge / padded step
        def _boundary():
            _accumulate(True)


def _partial_sums(p2, g2, n_main):
    """Run the Pallas reduction on the (arr_rows, 128) main slabs.

    Returns (num_splits, 2, fold_rows, 128) f32 partial sums.
    """
    arr_rows = p2.shape[0]

    # Tile-row selection: biggest 512-aligned tile up to 8192 rows; small
    # inputs use a single full block (legal even when not 8-row aligned).
    if arr_rows < _SUBLANES:
        tile_rows = arr_rows
    elif arr_rows < _CHUNK_ROWS:
        tile_rows = _round_down(arr_rows, _SUBLANES)
    else:
        tile_rows = min(_MAX_TILE_ROWS, _round_down(arr_rows, _CHUNK_ROWS))

    chunk_rows = _CHUNK_ROWS if (tile_rows % _CHUNK_ROWS == 0) else tile_rows
    fold_rows = _SUBLANES if (chunk_rows % _SUBLANES == 0) else 1

    total_steps = pl.cdiv(arr_rows, tile_rows)
    # Unconditional 2-way outer split whenever there is more than one step
    # (one half per v7x TensorCore); odd counts are rounded up and the padded
    # step is index-clamped and fully masked out below.
    num_splits = 2 if total_steps >= 2 else 1
    steps_per_split = pl.cdiv(total_steps, num_splits)

    tile_elems = tile_rows * _LANES
    needs_mask = (num_splits * steps_per_split * tile_elems) != n_main
    full_tiles = n_main // tile_elems        # tiles that are 100% valid

    def in_index_map(s, i):
        flat = s * steps_per_split + i
        # Clamp padded steps onto the last real block; their contribution is
        # zeroed by the in-kernel row mask (flat-index >= n_main).
        return (jnp.minimum(flat, total_steps - 1), 0)

    kernel = functools.partial(
        _maskiou_sums_kernel, n_valid=n_main, tile_rows=tile_rows,
        chunk_rows=chunk_rows, fold_rows=fold_rows, full_tiles=full_tiles,
        needs_mask=needs_mask)

    out_shape = jax.ShapeDtypeStruct((num_splits, 2, fold_rows, _LANES),
                                     jnp.float32)
    out_bytes = num_splits * 2 * fold_rows * _LANES * 4
    cost = pl.CostEstimate(
        flops=5 * n_main,
        transcendentals=n_main,                      # one sigmoid per element
        bytes_accessed=p2.nbytes + g2.nbytes + out_bytes)

    return pl.pallas_call(
        kernel,
        out_shape=out_shape,
        grid_spec=pltpu.PrefetchScalarGridSpec(
            num_scalar_prefetch=0,
            grid=(num_splits, steps_per_split),
            in_specs=[
                pl.BlockSpec((tile_rows, _LANES), in_index_map),
                pl.BlockSpec((tile_rows, _LANES), in_index_map),
            ],
            out_specs=pl.BlockSpec((1, 2, fold_rows, _LANES),
                                   lambda s, i: (s, 0, 0, 0)),
        ),
        compiler_params=pltpu.CompilerParams(
            dimension_semantics=("parallel", "arbitrary"),
            # 32 MiB is safe on every generation incl. v7x (64 MiB physical);
            # on v5e/v6e this could be swept to 48-64 MiB with larger tiles.
            vmem_limit_bytes=32 * 1024 * 1024),
        cost_estimate=cost,
    )(p2, g2)


def _pooled_sums(pred_mask, ground_truth_mask):
    """Batch-pooled sum(sigmoid(p)*g) and sum(sigmoid(p)) + sum(g)."""
    n = pred_mask.size
    p_flat = pred_mask.reshape(-1)                  # keep native dtype
    g_flat = ground_truth_mask.reshape(-1)

    arr_rows = n // _LANES
    n_main = arr_rows * _LANES

    inter = jnp.float32(0.0)
    both = jnp.float32(0.0)

    if n_main > 0:
        if n_main == n:
            p2 = p_flat.reshape(arr_rows, _LANES)   # pure reshape, no copy
            g2 = g_flat.reshape(arr_rows, _LANES)
        else:
            # Rare non-128-aligned case: slice the 128-aligned prefix for the
            # kernel (instead of jnp.pad-copying the whole padded array).
            p2 = p_flat[:n_main].reshape(arr_rows, _LANES)
            g2 = g_flat[:n_main].reshape(arr_rows, _LANES)
        partials = _partial_sums(p2, g2, n_main)
        inter = jnp.sum(partials[:, 0])
        both = jnp.sum(partials[:, 1])

    if n_main != n:
        # <128-element tail finished in plain JAX (tiny).
        pt = jax.nn.sigmoid(p_flat[n_main:].astype(jnp.float32))
        gt = g_flat[n_main:].astype(jnp.float32)
        inter = inter + jnp.sum(pt * gt)
        both = both + jnp.sum(pt + gt)

    return inter, both


@jax.jit
def mask_iou_loss(pred_mask, ground_truth_mask, pred_iou):
    """pred_mask, ground_truth_mask: [B, 1, H, W]; pred_iou: [B, 1]."""
    assert pred_mask.shape == ground_truth_mask.shape, (
        "pred_mask and ground_truth_mask should have the same shape.")

    intersection, total = _pooled_sums(pred_mask, ground_truth_mask)
    union = total - intersection                   # sum(p) + sum(g) - inter
    iou = (intersection + _EPS) / (union + _EPS)   # batch-pooled scalar IoU
    diff = iou - pred_iou.astype(jnp.float32)      # (B, 1)
    return jnp.mean(diff * diff)


def _reference(pred_mask, ground_truth_mask, pred_iou):
    p = jax.nn.sigmoid(pred_mask.astype(jnp.float32))
    g = ground_truth_mask.astype(jnp.float32)
    intersection = jnp.sum(p * g)
    union = jnp.sum(p) + jnp.sum(g) - intersection
    iou = (intersection + _EPS) / (union + _EPS)
    return jnp.mean((iou - pred_iou.astype(jnp.float32)) ** 2)


if __name__ == "__main__":
    key = jax.random.PRNGKey(0)
    k1, k2, k3 = jax.random.split(key, 3)

    B, C, H, W = 2, 1, 16, 16
    pred_mask = jax.random.normal(k1, (B, C, H, W), dtype=jnp.float32)
    ground_truth_mask = (
        jax.random.uniform(k2, (B, C, H, W)) > 0.5).astype(jnp.float32)
    pred_iou = jax.random.uniform(k3, (B, 1), dtype=jnp.float32)

    loss = mask_iou_loss(pred_mask, ground_truth_mask, pred_iou)
    jax.block_until_ready(loss)

    ref = _reference(pred_mask, ground_truth_mask, pred_iou)
    assert jnp.allclose(loss, ref, atol=1e-5, rtol=1e-5), (loss, ref)

    print("KERNEL_OK")
</pallas_src>

<mosaic_0001>
module attributes {stable_mosaic.version = 11 : i64} {
  func.func @_maskiou_sums_kernel(%arg0: i32, %arg1: i32, %arg2: memref<4x128xf32, #tpu.memory_space<vmem>>, %arg3: memref<4x128xf32, #tpu.memory_space<vmem>>, %arg4: memref<1x2x1x128xf32, #tpu.memory_space<vmem>>) attributes {dimension_semantics = [#tpu.dimension_semantics<parallel>, #tpu.dimension_semantics<arbitrary>], iteration_bounds = array<i64: 1, 1>, scalar_prefetch = 0 : i64, scratch_operands = 0 : i64, tpu.core_type = #tpu.core_type<tc>, window_params = [{transform_indices = @transform_0, window_bounds = array<i64: 4, 128>}, {transform_indices = @transform_1, window_bounds = array<i64: 4, 128>}, {transform_indices = @transform_2, window_bounds = array<i64: 1, 2, 1, 128>}]} {
    %c0_i32 = arith.constant 0 : i32
    %0 = arith.cmpi eq, %arg1, %c0_i32 : i32
    %1 = arith.extui %0 : i1 to i32
    %c0_i32_0 = arith.constant 0 : i32
    %2 = arith.cmpi ne, %1, %c0_i32_0 : i32
    scf.if %2 {
      %cst_21 = arith.constant 0.000000e+00 : f32
      %28 = vector.broadcast %cst_21 : f32 to vector<1x2x1x128xf32>
      %c0_22 = arith.constant 0 : index
      %c0_23 = arith.constant 0 : index
      %c0_24 = arith.constant 0 : index
      %c0_25 = arith.constant 0 : index
      %29 = vector.load %arg4[%c0_22, %c0_23, %c0_24, %c0_25] : memref<1x2x1x128xf32, #tpu.memory_space<vmem>>, vector<1x2x1x128xf32>
      tpu.vector_store %arg4[%c0_22, %c0_23, %c0_24, %c0_25], %28 {strides = array<i32>} : memref<1x2x1x128xf32, #tpu.memory_space<vmem>>, vector<1x2x1x128xf32>,
    } else {
    }
    %c0 = arith.constant 0 : index
    %c0_1 = arith.constant 0 : index
    %3 = vector.load %arg2[%c0, %c0_1] : memref<4x128xf32, #tpu.memory_space<vmem>>, vector<4x128xf32>
    %4 = arith.negf %3 : vector<4x128xf32>
    %5 = math.exp %4 : vector<4x128xf32>
    %cst = arith.constant 1.000000e+00 : f32
    %6 = vector.broadcast %cst : f32 to vector<4x128xf32>
    %7 = arith.addf %6, %5 : vector<4x128xf32>
    %8 = arith.divf %6, %7 : vector<4x128xf32>
    %c0_2 = arith.constant 0 : index
    %c0_3 = arith.constant 0 : index
    %9 = vector.load %arg3[%c0_2, %c0_3] : memref<4x128xf32, #tpu.memory_space<vmem>>, vector<4x128xf32>
    %10 = arith.mulf %8, %9 : vector<4x128xf32>
    %cst_4 = arith.constant dense<0.000000e+00> : vector<128xf32>
    %11 = vector.multi_reduction <add>, %10, %cst_4 [0] : vector<4x128xf32> to vector<128xf32>
    %12 = vector.shape_cast %11 : vector<128xf32> to vector<1x128xf32>
    %13 = arith.addf %8, %9 : vector<4x128xf32>
    %cst_5 = arith.constant dense<0.000000e+00> : vector<128xf32>
    %14 = vector.multi_reduction <add>, %13, %cst_5 [0] : vector<4x128xf32> to vector<128xf32>
    %15 = vector.shape_cast %14 : vector<128xf32> to vector<1x128xf32>
    %c0_6 = arith.constant 0 : index
    %c0_7 = arith.constant 0 : index
    %c0_8 = arith.constant 0 : index
    %c0_9 = arith.constant 0 : index
    %16 = vector.load %arg4[%c0_6, %c0_7, %c0_8, %c0_9] : memref<1x2x1x128xf32, #tpu.memory_space<vmem>>, vector<1x1x1x128xf32>
    %17 = vector.shape_cast %16 : vector<1x1x1x128xf32> to vector<1x128xf32>
    %18 = arith.addf %17, %12 : vector<1x128xf32>
    %c0_10 = arith.constant 0 : index
    %c0_11 = arith.constant 0 : index
    %c0_12 = arith.constant 0 : index
    %c0_13 = arith.constant 0 : index
    %19 = vector.load %arg4[%c0_10, %c0_11, %c0_12, %c0_13] : memref<1x2x1x128xf32, #tpu.memory_space<vmem>>, vector<1x1x1x128xf32>
    %20 = vector.shape_cast %19 : vector<1x1x1x128xf32> to vector<1x128xf32>
    %21 = vector.shape_cast %18 : vector<1x128xf32> to vector<1x1x1x128xf32>
    tpu.vector_store %arg4[%c0_10, %c0_11, %c0_12, %c0_13], %21 {strides = array<i32>} : memref<1x2x1x128xf32, #tpu.memory_space<vmem>>, vector<1x1x1x128xf32>,
    %c0_14 = arith.constant 0 : index
    %c1 = arith.constant 1 : index
    %c0_15 = arith.constant 0 : index
    %c0_16 = arith.constant 0 : index
    %22 = vector.load %arg4[%c0_14, %c1, %c0_15, %c0_16] : memref<1x2x1x128xf32, #tpu.memory_space<vmem>>, vector<1x1x1x128xf32>
    %23 = vector.shape_cast %22 : vector<1x1x1x128xf32> to vector<1x128xf32>
    %24 = arith.addf %23, %15 : vector<1x128xf32>
    %c0_17 = arith.constant 0 : index
    %c1_18 = arith.constant 1 : index
    %c0_19 = arith.constant 0 : index
    %c0_20 = arith.constant 0 : index
    %25 = vector.load %arg4[%c0_17, %c1_18, %c0_19, %c0_20] : memref<1x2x1x128xf32, #tpu.memory_space<vmem>>, vector<1x1x1x128xf32>
    %26 = vector.shape_cast %25 : vector<1x1x1x128xf32> to vector<1x128xf32>
    %27 = vector.shape_cast %24 : vector<1x128xf32> to vector<1x1x1x128xf32>
    tpu.vector_store %arg4[%c0_17, %c1_18, %c0_19, %c0_20], %27 {strides = array<i32>} : memref<1x2x1x128xf32, #tpu.memory_space<vmem>>, vector<1x1x1x128xf32>,
    return
  }
  func.func @transform_0(%arg0: i32, %arg1: i32) -> (i32, i32) {
    %c1_i32 = arith.constant 1 : i32
    %0 = arith.muli %arg0, %c1_i32 : i32
    %1 = arith.addi %0, %arg1 : i32
    %c0_i32 = arith.constant 0 : i32
    %2 = arith.minsi %1, %c0_i32 : i32
    %c0_i32_0 = arith.constant 0 : i32
    %c0_i32_1 = arith.constant 0 : i32
    return %2, %c0_i32_0 : i32, i32
  }
  func.func @transform_1(%arg0: i32, %arg1: i32) -> (i32, i32) {
    %c1_i32 = arith.constant 1 : i32
    %0 = arith.muli %arg0, %c1_i32 : i32
    %1 = arith.addi %0, %arg1 : i32
    %c0_i32 = arith.constant 0 : i32
    %2 = arith.minsi %1, %c0_i32 : i32
    %c0_i32_0 = arith.constant 0 : i32
    %c0_i32_1 = arith.constant 0 : i32
    return %2, %c0_i32_0 : i32, i32
  }
  func.func @transform_2(%arg0: i32, %arg1: i32) -> (i32, i32, i32, i32) {
    %c0_i32 = arith.constant 0 : i32
    %c0_i32_0 = arith.constant 0 : i32
    %c0_i32_1 = arith.constant 0 : i32
    %c0_i32_2 = arith.constant 0 : i32
    return %arg0, %c0_i32, %c0_i32_0, %c0_i32_1 : i32, i32, i32, i32
  }
}

</mosaic_0001>

<llo_original>
// kernel: mask_iou_loss.1
$region0: #{mask_iou_loss.1}
  #allocation0 [shape = 'u32[]', space=smem, size = 0x4, offset = 0x4, fixed_abs, tag = 'smem constant byte address 0x4 - core index']
  #allocation1 [shape = 'u32[144,128]{1,0:T(1,128)}', space=vmem, size = 0x12000, scoped, tag = 'internal scratch']
  %s0 = inlined_call_operand.vmem [shape: f32[4,128], index: 0, kind: input, shape index: {}]
  %s1 = inlined_call_operand.vmem [shape: f32[4,128], index: 1, kind: input, shape index: {}]
  %s2 = inlined_call_operand.vmem [shape: f32[1,2,1,128], index: 2, kind: output, shape index: {}]
  %s3 = sld [smem:[#allocation0]]
  $region22: #{mask_iou_loss.1} parent=0
    _
  %s5 = ssub.s32 1, %s3
  %s6 = scalar_select 0, %s5, %s3
  // Predicated region
  $region2: #{mask_iou_loss.1} parent=0 // pred_check
    _
  $region3: #{mask_iou_loss.1} parent=0 // pred_check_branch
    %8 = sbr.rel (0) target = $region5
  $region4: #{mask_iou_loss.1} parent=0 // pred_region
    %s9 = sadd.s32 0, 0
    %p10 = scmp.lt.s32.totalorder %s9, 0
    %s11 = scalar_select %p10, %s9, 0
    %p12 = scmp.lt.s32.totalorder %s11, 0
    %s13 = scalar_select %p12, %s11, 0
    %s14 = smul.addr %s13, 4
    %s15 = scalar_lea.vmem %s0, %s14
    %s16 = sadd.s32 0, 0
    %p17 = scmp.lt.s32.totalorder %s16, 0
    %s18 = scalar_select %p17, %s16, 0
  $region5: #{mask_iou_loss.1} parent=0 // pred_fallthru
    _
  // Predicated region
  $region6: #{mask_iou_loss.1} parent=0 // pred_check
    _
  $region7: #{mask_iou_loss.1} parent=0 // pred_check_branch
    %20 = sbr.rel (0) target = $region9
  $region8: #{mask_iou_loss.1} parent=0 // pred_region
    %s21 = sadd.s32 0, 0
    %p22 = scmp.lt.s32.totalorder %s21, 0
    %s23 = scalar_select %p22, %s21, 0
    %p24 = scmp.lt.s32.totalorder %s23, 0
    %s25 = scalar_select %p24, %s23, 0
    %s26 = smul.addr %s25, 4
    %s27 = scalar_lea.vmem %s1, %s26
    %s28 = sadd.s32 0, 0
    %p29 = scmp.lt.s32.totalorder %s28, 0
    %s30 = scalar_select %p29, %s28, 0
  $region9: #{mask_iou_loss.1} parent=0 // pred_fallthru
    _
  %s31 = sadd.s32 0, 0
  %p32 = scmp.lt.s32.totalorder %s31, 0
  %s33 = scalar_select %p32, %s31, 0
  %p34 = scmp.lt.s32.totalorder %s33, 0
  %s35 = scalar_select %p34, %s33, 0
  %s36 = smul.addr %s35, 4
  %s37 = scalar_lea.vmem %s0, %s36
  %s38 = sadd.s32 0, 0
  %p39 = scmp.lt.s32.totalorder %s38, 0
  %s40 = scalar_select %p39, %s38, 0
  %p41 = scmp.lt.s32.totalorder %s40, 0
  %s42 = scalar_select %p41, %s40, 0
  %s43 = smul.addr %s42, 4
  %s44 = scalar_lea.vmem %s1, %s43
  %s45 = sadd.s32 0, 0
  %p46 = scmp.lt.s32.totalorder %s45, 0
  %s47 = scalar_select %p46, %s45, 0
  %p48 = scmp.lt.s32.totalorder %s47, 0
  %s49 = scalar_select %p48, %s47, 0
  %s50 = smul.addr %s49, 4
  %s51 = scalar_lea.vmem %s0, %s50
  %s52 = sadd.s32 0, 0
  %p53 = scmp.lt.s32.totalorder %s52, 0
  %s54 = scalar_select %p53, %s52, 0
  %s55 = sadd.s32 0, 0
  %p56 = scmp.lt.s32.totalorder %s55, 0
  %s57 = scalar_select %p56, %s55, 0
  %p58 = scmp.lt.s32.totalorder %s57, 0
  %s59 = scalar_select %p58, %s57, 0
  %s60 = smul.addr %s59, 4
  %s61 = scalar_lea.vmem %s1, %s60
  %s62 = sadd.s32 0, 0
  %p63 = scmp.lt.s32.totalorder %s62, 0
  %s64 = scalar_select %p63, %s62, 0
  %p65 = scmp.eq.s32.totalorder 0, 0
  // Predicated region
  $region10: #{mask_iou_loss.1} parent=0 // pred_check
    %p66 = pneg %p65
  $region11: #{mask_iou_loss.1} parent=0 // pred_check_branch
    %68 = sbr.rel (%p66) target = $region13
  $region12: #{mask_iou_loss.1} parent=0 // pred_region
    %69 = vst [vmem:[%s2] sm:$0x1] 0.0
    %70 = vst [vmem:[%s2 + $0x1] sm:$0x1] 0.0
  $region13: #{mask_iou_loss.1} parent=0 // pred_fallthru
    _
  %v71 = vld [vmem:[%s51] sm:$0xf]
  %v72 = vxor.u32 %v71, 2147483648
  %v73 = vmul.f32 %v72, 1.442695
  %v74 = vpow.pop %v73
  %v75 = vadd.f32 %v74, 1.0
  %v76 = vrcp.pop %v75
  %v77 = vmul.f32 1.0, %v76
  %v78 = vld [vmem:[%s61] sm:$0xf]
  %v79 = vmul.f32 %v77, %v78
  %vm80 = vcmask 1043456
  %v81 = vsel %vm80, %v79, 0.0
  %v82 = vrot.slane %v81, 4
  %v83 = vadd.f32 %v81, %v82
  %v84 = vrot.slane %v83, 2
  %v85 = vadd.f32 %v83, %v84
  %v86 = vrot.slane %v85, 1
  %v87 = vadd.f32 %v85, %v86
  %v88 = vadd.f32 %v77, %v78
  %v89 = vsel %vm80, %v88, 0.0
  %v90 = vrot.slane %v89, 4
  %v91 = vadd.f32 %v89, %v90
  %v92 = vrot.slane %v91, 2
  %v93 = vadd.f32 %v91, %v92
  %v94 = vrot.slane %v93, 1
  %v95 = vadd.f32 %v93, %v94
  %v96 = vld [vmem:[%s2] sm:$0x1]
  %v97 = vadd.f32 %v96, %v87
  %98 = vst [vmem:[%s2] sm:$0x1] %v97
  %s99 = scalar_lea.vmem %s2, 1
  %v100 = vld [vmem:[%s99] sm:$0x1]
  %v101 = vadd.f32 %v100, %v95
  %102 = vst [vmem:[%s99] sm:$0x1] %v101
  // Predicated region
  $region14: #{mask_iou_loss.1} parent=0 // pred_check
    _
  $region15: #{mask_iou_loss.1} parent=0 // pred_check_branch
    %104 = sbr.rel (0) target = $region17
  $region16: #{mask_iou_loss.1} parent=0 // pred_region
    _
  $region17: #{mask_iou_loss.1} parent=0 // pred_fallthru
    _
  // Predicated region
  $region18: #{mask_iou_loss.1} parent=0 // pred_check
    _
  $region19: #{mask_iou_loss.1} parent=0 // pred_check_branch
    %106 = sbr.rel (0) target = $region21
  $region20: #{mask_iou_loss.1} parent=0 // pred_region
    _
  $region21: #{mask_iou_loss.1} parent=0 // pred_fallthru
    _

</llo_original>
